<compile_context>
chip_gen: v7x
topology: tpu7x:2x2x1
jax: 0.10.0
libtpu: 0.0.40
codegen_flags: <defaults>
</compile_context>

<pallas_src>
import functools

import jax
import jax.numpy as jnp
from jax.experimental import pallas as pl
from jax.experimental.pallas import tpu as pltpu


def conv_bn_kernel(w_ref, b_ref, x_ref, o_ref, acc_ref, xs_ref, *maybe_xp,
                   K, H, W, H_out, W_out, pad, dilation, c_tile, w_resident):
    # w_ref:  (n_c, co_tile, K*K*c_tile) if resident else (1, co_tile, K*K*c_tile)
    # b_ref:  (co_tile, 1)               folded BN bias (f32)
    # x_ref:  (1, c_tile, H*W)           one batch element, one channel chunk (flat)
    # o_ref:  (1, co_tile, H_out*Wp)     padded (lane-dense) output slab
    # acc_ref:(co_tile, Lw) f32          conv accumulator (persists over chunks)
    # xs_ref: (K*K*c_tile, Lw)           stacked shifted windows (input dtype)
    # maybe_xp: (c_tile, Hp*Wp + tail)   zero-padded plane (only when pad > 0)
    c = pl.program_id(2)
    n_c = pl.num_programs(2)
    Wp = W + 2 * pad
    Lw = H_out * Wp                      # padded-width slab (stripped in wrapper)

    @pl.when(c == 0)
    def _():
        acc_ref[...] = jnp.zeros_like(acc_ref)

    if pad > 0:
        xp_ref = maybe_xp[0]

        # Border/tail columns are never written by the interior copy, so a single
        # full zero at c == 0 keeps them zero for every channel chunk.
        @pl.when(c == 0)
        def _():
            xp_ref[...] = jnp.zeros_like(xp_ref)

        # Copy this chunk's rows into the padded plane (row stride Wp), input dtype.
        if H <= 64:
            for h in range(H):                           # small H: unrolled, static
                dst = (pad + h) * Wp + pad
                xp_ref[:, dst:dst + W] = x_ref[0, :, h * W:(h + 1) * W]
        else:
            def copy_row(h, carry):                      # large H: rolled loop
                xp_ref[:, pl.ds((pad + h) * Wp + pad, W)] = (
                    x_ref[0, :, pl.ds(h * W, W)])
                return carry
            jax.lax.fori_loop(0, H, copy_row, 0)

        # Stack the K*K shifted windows into one big contraction operand.
        for kh in range(K):
            for kw in range(K):
                t = kh * K + kw
                s = (kh * Wp + kw) * dilation
                xs_ref[t * c_tile:(t + 1) * c_tile, :] = xp_ref[:, s:s + Lw]
    else:
        # padding == 0: windows come straight from the x block; columns past the
        # valid data only ever feed output columns stripped in the wrapper.
        for kh in range(K):
            for kw in range(K):
                t = kh * K + kw
                s = (kh * Wp + kw) * dilation
                wcp = min(Lw, H * W - s)
                xs_ref[t * c_tile:(t + 1) * c_tile, :wcp] = x_ref[0, :, s:s + wcp]

    # Single fused MXU matmul: (co_tile, K*K*c_tile) @ (K*K*c_tile, Lw), f32 acc.
    w_blk = w_ref[c] if w_resident else w_ref[0]
    acc_ref[...] += jnp.dot(w_blk, xs_ref[...], preferred_element_type=jnp.float32)

    # Finalize on the last channel chunk: add folded-BN bias, one lane-dense store.
    @pl.when(c == n_c - 1)
    def _():
        res = acc_ref[...] + b_ref[...]                  # (co_tile, Lw) + (co_tile, 1)
        o_ref[0, :, :] = res.astype(o_ref.dtype)


def _tile_candidates(n):
    """n itself, then divisors of n that are multiples of 8, descending."""
    cands = [n]
    for t in range((n // 8) * 8, 0, -8):
        if t != n and n % t == 0:
            cands.append(t)
    return cands


def basic_conv2d(x, weight, gamma, beta, running_mean, running_var, *,
                 stride=1, padding=0, dilation=1, eps=1e-5,
                 vmem_budget_bytes=24 * 1024 * 1024):
    """y = BatchNorm2d(Conv2d(x, weight, bias=None))  (eval-mode BN), NCHW."""
    B, C_in, H, W = x.shape
    C_out, C_in_w, K, K2 = weight.shape
    assert C_in_w == C_in and K == K2
    assert stride == 1, "TODO(synk): stride > 1 not implemented"

    H_out = H + 2 * padding - dilation * (K - 1)
    W_out = W + 2 * padding - dilation * (K - 1)
    assert H_out > 0 and W_out > 0
    Hp, Wp = H + 2 * padding, W + 2 * padding
    Lw = H_out * Wp                       # padded-width slab length
    tail = (K - 1) * dilation             # extra xp columns read by the last taps
    itemsize = x.dtype.itemsize

    # Fold eval-mode BN scale into the conv weights (input dtype for native-rate
    # MXU); keep the bias in f32 for the epilogue add onto the f32 accumulator.
    scale = (gamma.astype(jnp.float32) *
             jax.lax.rsqrt(running_var.astype(jnp.float32) + eps))
    bias = beta.astype(jnp.float32) - running_mean.astype(jnp.float32) * scale
    w_folded = (weight.astype(jnp.float32) * scale[:, None, None, None]).astype(x.dtype)

    w_bytes = C_out * C_in * K * K * itemsize
    w_resident = w_bytes <= 4 * 1024 * 1024   # keep all chunks in VMEM if small

    def estimate(co_t, c_t):
        n_c_ = C_in // c_t
        kkc = K * K * c_t
        x_blk = c_t * H * W * itemsize
        w_blk = (n_c_ if w_resident else 1) * co_t * kkc * itemsize
        o_blk = co_t * Lw * itemsize
        acc = co_t * Lw * 4
        xs = kkc * Lw * itemsize
        xp = c_t * (Hp * Wp + tail) * itemsize if padding > 0 else 0
        return 2 * x_blk + 2 * w_blk + 2 * o_blk + acc + xs + xp + 2 * C_out * 4

    co_tile, c_tile = _tile_candidates(C_out)[-1], _tile_candidates(C_in)[-1]
    found = False
    for co_t in _tile_candidates(C_out):
        for c_t in _tile_candidates(C_in):
            if estimate(co_t, c_t) <= vmem_budget_bytes:
                co_tile, c_tile = co_t, c_t
                found = True
                break
        if found:
            break

    n_c = C_in // c_tile
    n_co = C_out // co_tile
    KKC = K * K * c_tile

    # (C_out, C_in, K, K) -> (n_c, C_out, K*K*c_tile); contraction order (tap, ci).
    w_chunks = jnp.reshape(
        jnp.transpose(w_folded.reshape(C_out, n_c, c_tile, K, K), (1, 0, 3, 4, 2)),
        (n_c, C_out, KKC))
    bias2d = bias.reshape(C_out, 1)
    x_flat = x.reshape(B, C_in, H * W)    # metadata-only reshape -> lane-dense DMA

    if w_resident:
        w_spec = pl.BlockSpec((n_c, co_tile, KKC), lambda b, co, c: (0, co, 0))
    else:
        w_spec = pl.BlockSpec((1, co_tile, KKC), lambda b, co, c: (c, co, 0))

    kernel = functools.partial(
        conv_bn_kernel, K=K, H=H, W=W, H_out=H_out, W_out=W_out,
        pad=padding, dilation=dilation, c_tile=c_tile, w_resident=w_resident)

    scratch = [pltpu.VMEM((co_tile, Lw), jnp.float32),   # conv accumulator
               pltpu.VMEM((KKC, Lw), x.dtype)]           # stacked windows
    if padding > 0:
        scratch.append(pltpu.VMEM((c_tile, Hp * Wp + tail), x.dtype))  # padded plane

    est = estimate(co_tile, c_tile)
    vmem_limit = int(min(max(32 * 1024 * 1024, est * 3 // 2), 60 * 1024 * 1024))

    flops = 2 * B * C_out * C_in * K * K * H_out * W_out
    bytes_accessed = int(x.size * itemsize + w_chunks.size * itemsize
                         + B * C_out * Lw * itemsize + 2 * C_out * 4)

    out_padded = pl.pallas_call(
        kernel,
        out_shape=jax.ShapeDtypeStruct((B, C_out, Lw), x.dtype),
        grid_spec=pltpu.PrefetchScalarGridSpec(
            num_scalar_prefetch=0,
            grid=(B, n_co, n_c),                         # reduction axis last
            in_specs=[
                w_spec,
                pl.BlockSpec((co_tile, 1), lambda b, co, c: (co, 0)),
                pl.BlockSpec((1, c_tile, H * W), lambda b, co, c: (b, c, 0)),
            ],
            out_specs=pl.BlockSpec((1, co_tile, Lw), lambda b, co, c: (b, co, 0)),
            scratch_shapes=scratch,
        ),
        compiler_params=pltpu.CompilerParams(
            dimension_semantics=("parallel", "parallel", "arbitrary"),
            vmem_limit_bytes=vmem_limit),
        cost_estimate=pl.CostEstimate(flops=flops, transcendentals=0,
                                      bytes_accessed=bytes_accessed),
    )(w_chunks, bias2d, x_flat)

    # Strip the Wp-padding garbage columns (kernel emitted a lane-dense padded slab).
    return out_padded.reshape(B, C_out, H_out, Wp)[:, :, :, :W_out]


def reference(x, weight, gamma, beta, running_mean, running_var, *,
              stride=1, padding=1, dilation=1, eps=1e-5):
    conv = jax.lax.conv_general_dilated(
        x, weight, window_strides=(stride, stride),
        padding=[(padding, padding), (padding, padding)],
        rhs_dilation=(dilation, dilation),
        dimension_numbers=("NCHW", "OIHW", "NCHW"),
        precision=jax.lax.Precision.HIGHEST)
    inv = jax.lax.rsqrt(running_var + eps)
    return ((conv - running_mean[None, :, None, None]) *
            (gamma * inv)[None, :, None, None] + beta[None, :, None, None])


if __name__ == "__main__":
    key = jax.random.PRNGKey(0)
    kx, kw, kg, kb, km, kv = jax.random.split(key, 6)

    B, C_in, C_out, H, W = 2, 4, 8, 16, 16
    K, stride, padding, dilation = 3, 1, 1, 1

    x = jax.random.normal(kx, (B, C_in, H, W), dtype=jnp.float32)

    # Conv2d default init scale: kaiming_uniform(a=sqrt(5)) -> U(+-1/sqrt(fan_in)).
    fan_in = C_in * K * K
    bound = 1.0 / jnp.sqrt(jnp.float32(fan_in))
    weight = jax.random.uniform(kw, (C_out, C_in, K, K), jnp.float32, -bound, bound)

    # BatchNorm2d parameters / running statistics (eval mode).
    gamma = jax.random.uniform(kg, (C_out,), jnp.float32, 0.5, 1.5)
    beta = 0.1 * jax.random.normal(kb, (C_out,), dtype=jnp.float32)
    running_mean = 0.1 * jax.random.normal(km, (C_out,), dtype=jnp.float32)
    running_var = jax.random.uniform(kv, (C_out,), jnp.float32, 0.5, 1.5)

    out = basic_conv2d(x, weight, gamma, beta, running_mean, running_var,
                       stride=stride, padding=padding, dilation=dilation)
    out = jax.block_until_ready(out)

    ref = reference(x, weight, gamma, beta, running_mean, running_var,
                    stride=stride, padding=padding, dilation=dilation)

    assert out.shape == (B, C_out, H, W)
    err = float(jnp.max(jnp.abs(out - ref)))
    # Small slack for MXU multi-pass f32 matmul / accumulation-order effects.
    assert err < 5e-3, f"mismatch vs reference: max abs err {err}"
    print("KERNEL_OK")
</pallas_src>

<mosaic_0001>
module attributes {stable_mosaic.version = 11 : i64} {
  func.func @conv_bn_kernel(%arg0: i32, %arg1: i32, %arg2: i32, %arg3: memref<1x8x36xf32, #tpu.memory_space<vmem>>, %arg4: memref<8x1xf32, #tpu.memory_space<vmem>>, %arg5: memref<1x4x256xf32, #tpu.memory_space<vmem>>, %arg6: memref<1x8x288xf32, #tpu.memory_space<vmem>>, %arg7: memref<8x288xf32, #tpu.memory_space<vmem>>, %arg8: memref<36x288xf32, #tpu.memory_space<vmem>>, %arg9: memref<4x326xf32, #tpu.memory_space<vmem>>) attributes {dimension_semantics = [#tpu.dimension_semantics<parallel>, #tpu.dimension_semantics<parallel>, #tpu.dimension_semantics<arbitrary>], iteration_bounds = array<i64: 2, 1, 1>, scalar_prefetch = 0 : i64, scratch_operands = 3 : i64, tpu.core_type = #tpu.core_type<tc>, window_params = [{transform_indices = @transform_0, window_bounds = array<i64: 1, 8, 36>}, {transform_indices = @transform_1, window_bounds = array<i64: 8, 1>}, {transform_indices = @transform_2, window_bounds = array<i64: 1, 4, 256>}, {transform_indices = @transform_3, window_bounds = array<i64: 1, 8, 288>}]} {
    %c0_i32 = arith.constant 0 : i32
    %0 = arith.cmpi eq, %arg2, %c0_i32 : i32
    %1 = arith.extui %0 : i1 to i32
    %c0_i32_0 = arith.constant 0 : i32
    %2 = arith.cmpi ne, %1, %c0_i32_0 : i32
    scf.if %2 {
      %cst_86 = arith.constant 0.000000e+00 : f32
      %83 = vector.broadcast %cst_86 : f32 to vector<8x288xf32>
      %c0_87 = arith.constant 0 : index
      %c0_88 = arith.constant 0 : index
      %84 = vector.load %arg7[%c0_87, %c0_88] : memref<8x288xf32, #tpu.memory_space<vmem>>, vector<8x288xf32>
      tpu.vector_store %arg7[%c0_87, %c0_88], %83 {strides = array<i32>} : memref<8x288xf32, #tpu.memory_space<vmem>>, vector<8x288xf32>,
    } else {
    }
    %c0_i32_1 = arith.constant 0 : i32
    %3 = arith.cmpi eq, %arg2, %c0_i32_1 : i32
    %4 = arith.extui %3 : i1 to i32
    %c0_i32_2 = arith.constant 0 : i32
    %5 = arith.cmpi ne, %4, %c0_i32_2 : i32
    scf.if %5 {
      %cst_86 = arith.constant 0.000000e+00 : f32
      %83 = vector.broadcast %cst_86 : f32 to vector<4x326xf32>
      %c0_87 = arith.constant 0 : index
      %c0_88 = arith.constant 0 : index
      %84 = vector.load %arg9[%c0_87, %c0_88] : memref<4x326xf32, #tpu.memory_space<vmem>>, vector<4x326xf32>
      tpu.vector_store %arg9[%c0_87, %c0_88], %83 {strides = array<i32>} : memref<4x326xf32, #tpu.memory_space<vmem>>, vector<4x326xf32>,
    } else {
    }
    %c0 = arith.constant 0 : index
    %c0_3 = arith.constant 0 : index
    %c0_4 = arith.constant 0 : index
    %6 = vector.load %arg5[%c0, %c0_3, %c0_4] : memref<1x4x256xf32, #tpu.memory_space<vmem>>, vector<1x4x16xf32>
    %7 = vector.shape_cast %6 : vector<1x4x16xf32> to vector<4x16xf32>
    %c0_5 = arith.constant 0 : index
    %c19 = arith.constant 19 : index
    %8 = vector.load %arg9[%c0_5, %c19] : memref<4x326xf32, #tpu.memory_space<vmem>>, vector<4x16xf32>
    tpu.vector_store %arg9[%c0_5, %c19], %7 {strides = array<i32>} : memref<4x326xf32, #tpu.memory_space<vmem>>, vector<4x16xf32>,
    %c0_6 = arith.constant 0 : index
    %c0_7 = arith.constant 0 : index
    %c16 = arith.constant 16 : index
    %9 = vector.load %arg5[%c0_6, %c0_7, %c16] : memref<1x4x256xf32, #tpu.memory_space<vmem>>, vector<1x4x16xf32>
    %10 = vector.shape_cast %9 : vector<1x4x16xf32> to vector<4x16xf32>
    %c0_8 = arith.constant 0 : index
    %c37 = arith.constant 37 : index
    %11 = vector.load %arg9[%c0_8, %c37] : memref<4x326xf32, #tpu.memory_space<vmem>>, vector<4x16xf32>
    tpu.vector_store %arg9[%c0_8, %c37], %10 {strides = array<i32>} : memref<4x326xf32, #tpu.memory_space<vmem>>, vector<4x16xf32>,
    %c0_9 = arith.constant 0 : index
    %c0_10 = arith.constant 0 : index
    %c32 = arith.constant 32 : index
    %12 = vector.load %arg5[%c0_9, %c0_10, %c32] : memref<1x4x256xf32, #tpu.memory_space<vmem>>, vector<1x4x16xf32>
    %13 = vector.shape_cast %12 : vector<1x4x16xf32> to vector<4x16xf32>
    %c0_11 = arith.constant 0 : index
    %c55 = arith.constant 55 : index
    %14 = vector.load %arg9[%c0_11, %c55] : memref<4x326xf32, #tpu.memory_space<vmem>>, vector<4x16xf32>
    tpu.vector_store %arg9[%c0_11, %c55], %13 {strides = array<i32>} : memref<4x326xf32, #tpu.memory_space<vmem>>, vector<4x16xf32>,
    %c0_12 = arith.constant 0 : index
    %c0_13 = arith.constant 0 : index
    %c48 = arith.constant 48 : index
    %15 = vector.load %arg5[%c0_12, %c0_13, %c48] : memref<1x4x256xf32, #tpu.memory_space<vmem>>, vector<1x4x16xf32>
    %16 = vector.shape_cast %15 : vector<1x4x16xf32> to vector<4x16xf32>
    %c0_14 = arith.constant 0 : index
    %c73 = arith.constant 73 : index
    %17 = vector.load %arg9[%c0_14, %c73] : memref<4x326xf32, #tpu.memory_space<vmem>>, vector<4x16xf32>
    tpu.vector_store %arg9[%c0_14, %c73], %16 {strides = array<i32>} : memref<4x326xf32, #tpu.memory_space<vmem>>, vector<4x16xf32>,
    %c0_15 = arith.constant 0 : index
    %c0_16 = arith.constant 0 : index
    %c64 = arith.constant 64 : index
    %18 = vector.load %arg5[%c0_15, %c0_16, %c64] : memref<1x4x256xf32, #tpu.memory_space<vmem>>, vector<1x4x16xf32>
    %19 = vector.shape_cast %18 : vector<1x4x16xf32> to vector<4x16xf32>
    %c0_17 = arith.constant 0 : index
    %c91 = arith.constant 91 : index
    %20 = vector.load %arg9[%c0_17, %c91] : memref<4x326xf32, #tpu.memory_space<vmem>>, vector<4x16xf32>
    tpu.vector_store %arg9[%c0_17, %c91], %19 {strides = array<i32>} : memref<4x326xf32, #tpu.memory_space<vmem>>, vector<4x16xf32>,
    %c0_18 = arith.constant 0 : index
    %c0_19 = arith.constant 0 : index
    %c80 = arith.constant 80 : index
    %21 = vector.load %arg5[%c0_18, %c0_19, %c80] : memref<1x4x256xf32, #tpu.memory_space<vmem>>, vector<1x4x16xf32>
    %22 = vector.shape_cast %21 : vector<1x4x16xf32> to vector<4x16xf32>
    %c0_20 = arith.constant 0 : index
    %c109 = arith.constant 109 : index
    %23 = vector.load %arg9[%c0_20, %c109] : memref<4x326xf32, #tpu.memory_space<vmem>>, vector<4x16xf32>
    tpu.vector_store %arg9[%c0_20, %c109], %22 {strides = array<i32>} : memref<4x326xf32, #tpu.memory_space<vmem>>, vector<4x16xf32>,
    %c0_21 = arith.constant 0 : index
    %c0_22 = arith.constant 0 : index
    %c96 = arith.constant 96 : index
    %24 = vector.load %arg5[%c0_21, %c0_22, %c96] : memref<1x4x256xf32, #tpu.memory_space<vmem>>, vector<1x4x16xf32>
    %25 = vector.shape_cast %24 : vector<1x4x16xf32> to vector<4x16xf32>
    %c0_23 = arith.constant 0 : index
    %c127 = arith.constant 127 : index
    %26 = vector.load %arg9[%c0_23, %c127] : memref<4x326xf32, #tpu.memory_space<vmem>>, vector<4x16xf32>
    tpu.vector_store %arg9[%c0_23, %c127], %25 {strides = array<i32>} : memref<4x326xf32, #tpu.memory_space<vmem>>, vector<4x16xf32>,
    %c0_24 = arith.constant 0 : index
    %c0_25 = arith.constant 0 : index
    %c112 = arith.constant 112 : index
    %27 = vector.load %arg5[%c0_24, %c0_25, %c112] : memref<1x4x256xf32, #tpu.memory_space<vmem>>, vector<1x4x16xf32>
    %28 = vector.shape_cast %27 : vector<1x4x16xf32> to vector<4x16xf32>
    %c0_26 = arith.constant 0 : index
    %c145 = arith.constant 145 : index
    %29 = vector.load %arg9[%c0_26, %c145] : memref<4x326xf32, #tpu.memory_space<vmem>>, vector<4x16xf32>
    tpu.vector_store %arg9[%c0_26, %c145], %28 {strides = array<i32>} : memref<4x326xf32, #tpu.memory_space<vmem>>, vector<4x16xf32>,
    %c0_27 = arith.constant 0 : index
    %c0_28 = arith.constant 0 : index
    %c128 = arith.constant 128 : index
    %30 = vector.load %arg5[%c0_27, %c0_28, %c128] : memref<1x4x256xf32, #tpu.memory_space<vmem>>, vector<1x4x16xf32>
    %31 = vector.shape_cast %30 : vector<1x4x16xf32> to vector<4x16xf32>
    %c0_29 = arith.constant 0 : index
    %c163 = arith.constant 163 : index
    %32 = vector.load %arg9[%c0_29, %c163] : memref<4x326xf32, #tpu.memory_space<vmem>>, vector<4x16xf32>
    tpu.vector_store %arg9[%c0_29, %c163], %31 {strides = array<i32>} : memref<4x326xf32, #tpu.memory_space<vmem>>, vector<4x16xf32>,
    %c0_30 = arith.constant 0 : index
    %c0_31 = arith.constant 0 : index
    %c144 = arith.constant 144 : index
    %33 = vector.load %arg5[%c0_30, %c0_31, %c144] : memref<1x4x256xf32, #tpu.memory_space<vmem>>, vector<1x4x16xf32>
    %34 = vector.shape_cast %33 : vector<1x4x16xf32> to vector<4x16xf32>
    %c0_32 = arith.constant 0 : index
    %c181 = arith.constant 181 : index
    %35 = vector.load %arg9[%c0_32, %c181] : memref<4x326xf32, #tpu.memory_space<vmem>>, vector<4x16xf32>
    tpu.vector_store %arg9[%c0_32, %c181], %34 {strides = array<i32>} : memref<4x326xf32, #tpu.memory_space<vmem>>, vector<4x16xf32>,
    %c0_33 = arith.constant 0 : index
    %c0_34 = arith.constant 0 : index
    %c160 = arith.constant 160 : index
    %36 = vector.load %arg5[%c0_33, %c0_34, %c160] : memref<1x4x256xf32, #tpu.memory_space<vmem>>, vector<1x4x16xf32>
    %37 = vector.shape_cast %36 : vector<1x4x16xf32> to vector<4x16xf32>
    %c0_35 = arith.constant 0 : index
    %c199 = arith.constant 199 : index
    %38 = vector.load %arg9[%c0_35, %c199] : memref<4x326xf32, #tpu.memory_space<vmem>>, vector<4x16xf32>
    tpu.vector_store %arg9[%c0_35, %c199], %37 {strides = array<i32>} : memref<4x326xf32, #tpu.memory_space<vmem>>, vector<4x16xf32>,
    %c0_36 = arith.constant 0 : index
    %c0_37 = arith.constant 0 : index
    %c176 = arith.constant 176 : index
    %39 = vector.load %arg5[%c0_36, %c0_37, %c176] : memref<1x4x256xf32, #tpu.memory_space<vmem>>, vector<1x4x16xf32>
    %40 = vector.shape_cast %39 : vector<1x4x16xf32> to vector<4x16xf32>
    %c0_38 = arith.constant 0 : index
    %c217 = arith.constant 217 : index
    %41 = vector.load %arg9[%c0_38, %c217] : memref<4x326xf32, #tpu.memory_space<vmem>>, vector<4x16xf32>
    tpu.vector_store %arg9[%c0_38, %c217], %40 {strides = array<i32>} : memref<4x326xf32, #tpu.memory_space<vmem>>, vector<4x16xf32>,
    %c0_39 = arith.constant 0 : index
    %c0_40 = arith.constant 0 : index
    %c192 = arith.constant 192 : index
    %42 = vector.load %arg5[%c0_39, %c0_40, %c192] : memref<1x4x256xf32, #tpu.memory_space<vmem>>, vector<1x4x16xf32>
    %43 = vector.shape_cast %42 : vector<1x4x16xf32> to vector<4x16xf32>
    %c0_41 = arith.constant 0 : index
    %c235 = arith.constant 235 : index
    %44 = vector.load %arg9[%c0_41, %c235] : memref<4x326xf32, #tpu.memory_space<vmem>>, vector<4x16xf32>
    tpu.vector_store %arg9[%c0_41, %c235], %43 {strides = array<i32>} : memref<4x326xf32, #tpu.memory_space<vmem>>, vector<4x16xf32>,
    %c0_42 = arith.constant 0 : index
    %c0_43 = arith.constant 0 : index
    %c208 = arith.constant 208 : index
    %45 = vector.load %arg5[%c0_42, %c0_43, %c208] : memref<1x4x256xf32, #tpu.memory_space<vmem>>, vector<1x4x16xf32>
    %46 = vector.shape_cast %45 : vector<1x4x16xf32> to vector<4x16xf32>
    %c0_44 = arith.constant 0 : index
    %c253 = arith.constant 253 : index
    %47 = vector.load %arg9[%c0_44, %c253] : memref<4x326xf32, #tpu.memory_space<vmem>>, vector<4x16xf32>
    tpu.vector_store %arg9[%c0_44, %c253], %46 {strides = array<i32>} : memref<4x326xf32, #tpu.memory_space<vmem>>, vector<4x16xf32>,
    %c0_45 = arith.constant 0 : index
    %c0_46 = arith.constant 0 : index
    %c224 = arith.constant 224 : index
    %48 = vector.load %arg5[%c0_45, %c0_46, %c224] : memref<1x4x256xf32, #tpu.memory_space<vmem>>, vector<1x4x16xf32>
    %49 = vector.shape_cast %48 : vector<1x4x16xf32> to vector<4x16xf32>
    %c0_47 = arith.constant 0 : index
    %c271 = arith.constant 271 : index
    %50 = vector.load %arg9[%c0_47, %c271] : memref<4x326xf32, #tpu.memory_space<vmem>>, vector<4x16xf32>
    tpu.vector_store %arg9[%c0_47, %c271], %49 {strides = array<i32>} : memref<4x326xf32, #tpu.memory_space<vmem>>, vector<4x16xf32>,
    %c0_48 = arith.constant 0 : index
    %c0_49 = arith.constant 0 : index
    %c240 = arith.constant 240 : index
    %51 = vector.load %arg5[%c0_48, %c0_49, %c240] : memref<1x4x256xf32, #tpu.memory_space<vmem>>, vector<1x4x16xf32>
    %52 = vector.shape_cast %51 : vector<1x4x16xf32> to vector<4x16xf32>
    %c0_50 = arith.constant 0 : index
    %c289 = arith.constant 289 : index
    %53 = vector.load %arg9[%c0_50, %c289] : memref<4x326xf32, #tpu.memory_space<vmem>>, vector<4x16xf32>
    tpu.vector_store %arg9[%c0_50, %c289], %52 {strides = array<i32>} : memref<4x326xf32, #tpu.memory_space<vmem>>, vector<4x16xf32>,
    %c0_51 = arith.constant 0 : index
    %c0_52 = arith.constant 0 : index
    %54 = vector.load %arg9[%c0_51, %c0_52] : memref<4x326xf32, #tpu.memory_space<vmem>>, vector<4x288xf32>
    %c0_53 = arith.constant 0 : index
    %c0_54 = arith.constant 0 : index
    %55 = vector.load %arg8[%c0_53, %c0_54] : memref<36x288xf32, #tpu.memory_space<vmem>>, vector<4x288xf32>
    tpu.vector_store %arg8[%c0_53, %c0_54], %54 {strides = array<i32>} : memref<36x288xf32, #tpu.memory_space<vmem>>, vector<4x288xf32>,
    %c0_55 = arith.constant 0 : index
    %c1 = arith.constant 1 : index
    %56 = vector.load %arg9[%c0_55, %c1] : memref<4x326xf32, #tpu.memory_space<vmem>>, vector<4x288xf32>
    %c4 = arith.constant 4 : index
    %c0_56 = arith.constant 0 : index
    %57 = vector.load %arg8[%c4, %c0_56] : memref<36x288xf32, #tpu.memory_space<vmem>>, vector<4x288xf32>
    tpu.vector_store %arg8[%c4, %c0_56], %56 {strides = array<i32>} : memref<36x288xf32, #tpu.memory_space<vmem>>, vector<4x288xf32>,
    %c0_57 = arith.constant 0 : index
    %c2 = arith.constant 2 : index
    %58 = vector.load %arg9[%c0_57, %c2] : memref<4x326xf32, #tpu.memory_space<vmem>>, vector<4x288xf32>
    %c8 = arith.constant 8 : index
    %c0_58 = arith.constant 0 : index
    %59 = vector.load %arg8[%c8, %c0_58] : memref<36x288xf32, #tpu.memory_space<vmem>>, vector<4x288xf32>
    tpu.vector_store %arg8[%c8, %c0_58], %58 {strides = array<i32>} : memref<36x288xf32, #tpu.memory_space<vmem>>, vector<4x288xf32>,
    %c0_59 = arith.constant 0 : index
    %c18 = arith.constant 18 : index
    %60 = vector.load %arg9[%c0_59, %c18] : memref<4x326xf32, #tpu.memory_space<vmem>>, vector<4x288xf32>
    %c12 = arith.constant 12 : index
    %c0_60 = arith.constant 0 : index
    %61 = vector.load %arg8[%c12, %c0_60] : memref<36x288xf32, #tpu.memory_space<vmem>>, vector<4x288xf32>
    tpu.vector_store %arg8[%c12, %c0_60], %60 {strides = array<i32>} : memref<36x288xf32, #tpu.memory_space<vmem>>, vector<4x288xf32>,
    %c0_61 = arith.constant 0 : index
    %c19_62 = arith.constant 19 : index
    %62 = vector.load %arg9[%c0_61, %c19_62] : memref<4x326xf32, #tpu.memory_space<vmem>>, vector<4x288xf32>
    %c16_63 = arith.constant 16 : index
    %c0_64 = arith.constant 0 : index
    %63 = vector.load %arg8[%c16_63, %c0_64] : memref<36x288xf32, #tpu.memory_space<vmem>>, vector<4x288xf32>
    tpu.vector_store %arg8[%c16_63, %c0_64], %62 {strides = array<i32>} : memref<36x288xf32, #tpu.memory_space<vmem>>, vector<4x288xf32>,
    %c0_65 = arith.constant 0 : index
    %c20 = arith.constant 20 : index
    %64 = vector.load %arg9[%c0_65, %c20] : memref<4x326xf32, #tpu.memory_space<vmem>>, vector<4x288xf32>
    %c20_66 = arith.constant 20 : index
    %c0_67 = arith.constant 0 : index
    %65 = vector.load %arg8[%c20_66, %c0_67] : memref<36x288xf32, #tpu.memory_space<vmem>>, vector<4x288xf32>
    tpu.vector_store %arg8[%c20_66, %c0_67], %64 {strides = array<i32>} : memref<36x288xf32, #tpu.memory_space<vmem>>, vector<4x288xf32>,
    %c0_68 = arith.constant 0 : index
    %c36 = arith.constant 36 : index
    %66 = vector.load %arg9[%c0_68, %c36] : memref<4x326xf32, #tpu.memory_space<vmem>>, vector<4x288xf32>
    %c24 = arith.constant 24 : index
    %c0_69 = arith.constant 0 : index
    %67 = vector.load %arg8[%c24, %c0_69] : memref<36x288xf32, #tpu.memory_space<vmem>>, vector<4x288xf32>
    tpu.vector_store %arg8[%c24, %c0_69], %66 {strides = array<i32>} : memref<36x288xf32, #tpu.memory_space<vmem>>, vector<4x288xf32>,
    %c0_70 = arith.constant 0 : index
    %c37_71 = arith.constant 37 : index
    %68 = vector.load %arg9[%c0_70, %c37_71] : memref<4x326xf32, #tpu.memory_space<vmem>>, vector<4x288xf32>
    %c28 = arith.constant 28 : index
    %c0_72 = arith.constant 0 : index
    %69 = vector.load %arg8[%c28, %c0_72] : memref<36x288xf32, #tpu.memory_space<vmem>>, vector<4x288xf32>
    tpu.vector_store %arg8[%c28, %c0_72], %68 {strides = array<i32>} : memref<36x288xf32, #tpu.memory_space<vmem>>, vector<4x288xf32>,
    %c0_73 = arith.constant 0 : index
    %c38 = arith.constant 38 : index
    %70 = vector.load %arg9[%c0_73, %c38] : memref<4x326xf32, #tpu.memory_space<vmem>>, vector<4x288xf32>
    %c32_74 = arith.constant 32 : index
    %c0_75 = arith.constant 0 : index
    %71 = vector.load %arg8[%c32_74, %c0_75] : memref<36x288xf32, #tpu.memory_space<vmem>>, vector<4x288xf32>
    tpu.vector_store %arg8[%c32_74, %c0_75], %70 {strides = array<i32>} : memref<36x288xf32, #tpu.memory_space<vmem>>, vector<4x288xf32>,
    %72 = arith.index_cast %arg2 : i32 to index
    %c0_76 = arith.constant 0 : index
    %c0_77 = arith.constant 0 : index
    %73 = vector.load %arg3[%72, %c0_76, %c0_77] : memref<1x8x36xf32, #tpu.memory_space<vmem>>, vector<1x8x36xf32>
    %74 = vector.shape_cast %73 : vector<1x8x36xf32> to vector<8x36xf32>
    %c0_78 = arith.constant 0 : index
    %c0_79 = arith.constant 0 : index
    %75 = vector.load %arg7[%c0_78, %c0_79] : memref<8x288xf32, #tpu.memory_space<vmem>>, vector<8x288xf32>
    %c0_80 = arith.constant 0 : index
    %c0_81 = arith.constant 0 : index
    %76 = vector.load %arg8[%c0_80, %c0_81] : memref<36x288xf32, #tpu.memory_space<vmem>>, vector<36x288xf32>
    %cst = arith.constant dense<0.000000e+00> : vector<8x288xf32>
    %77 = tpu.matmul %74, %76, %cst {dimension_numbers = #tpu.dot_dimension_numbers<[1], [0], [0], [1], [0, 0, 1, 1], [], []>} : vector<8x36xf32>, vector<36x288xf32>, vector<8x288xf32> -> vector<8x288xf32>
    %78 = arith.addf %75, %77 : vector<8x288xf32>
    %c0_82 = arith.constant 0 : index
    %c0_83 = arith.constant 0 : index
    %79 = vector.load %arg7[%c0_82, %c0_83] : memref<8x288xf32, #tpu.memory_space<vmem>>, vector<8x288xf32>
    tpu.vector_store %arg7[%c0_82, %c0_83], %78 {strides = array<i32>} : memref<8x288xf32, #tpu.memory_space<vmem>>, vector<8x288xf32>,
    %c0_i32_84 = arith.constant 0 : i32
    %80 = arith.cmpi eq, %arg2, %c0_i32_84 : i32
    %81 = arith.extui %80 : i1 to i32
    %c0_i32_85 = arith.constant 0 : i32
    %82 = arith.cmpi ne, %81, %c0_i32_85 : i32
    scf.if %82 {
      %c0_86 = arith.constant 0 : index
      %c0_87 = arith.constant 0 : index
      %83 = vector.load %arg7[%c0_86, %c0_87] : memref<8x288xf32, #tpu.memory_space<vmem>>, vector<8x288xf32>
      %c0_88 = arith.constant 0 : index
      %c0_89 = arith.constant 0 : index
      %84 = vector.load %arg4[%c0_88, %c0_89] : memref<8x1xf32, #tpu.memory_space<vmem>>, vector<8x1xf32>
      %85 = vector.broadcast %84 : vector<8x1xf32> to vector<8x288xf32>
      %86 = arith.addf %83, %85 : vector<8x288xf32>
      %c0_90 = arith.constant 0 : index
      %c0_91 = arith.constant 0 : index
      %c0_92 = arith.constant 0 : index
      %87 = vector.load %arg6[%c0_90, %c0_91, %c0_92] : memref<1x8x288xf32, #tpu.memory_space<vmem>>, vector<1x8x288xf32>
      %88 = vector.shape_cast %87 : vector<1x8x288xf32> to vector<8x288xf32>
      %89 = vector.shape_cast %86 : vector<8x288xf32> to vector<1x8x288xf32>
      tpu.vector_store %arg6[%c0_90, %c0_91, %c0_92], %89 {strides = array<i32>} : memref<1x8x288xf32, #tpu.memory_space<vmem>>, vector<1x8x288xf32>,
    } else {
    }
    return
  }
  func.func @transform_0(%arg0: i32, %arg1: i32, %arg2: i32) -> (i32, i32, i32) {
    %c0_i32 = arith.constant 0 : i32
    %c0_i32_0 = arith.constant 0 : i32
    %c0_i32_1 = arith.constant 0 : i32
    return %c0_i32, %arg1, %c0_i32_0 : i32, i32, i32
  }
  func.func @transform_1(%arg0: i32, %arg1: i32, %arg2: i32) -> (i32, i32) {
    %c0_i32 = arith.constant 0 : i32
    %c0_i32_0 = arith.constant 0 : i32
    return %arg1, %c0_i32 : i32, i32
  }
  func.func @transform_2(%arg0: i32, %arg1: i32, %arg2: i32) -> (i32, i32, i32) {
    %c0_i32 = arith.constant 0 : i32
    %c0_i32_0 = arith.constant 0 : i32
    return %arg0, %arg2, %c0_i32 : i32, i32, i32
  }
  func.func @transform_3(%arg0: i32, %arg1: i32, %arg2: i32) -> (i32, i32, i32) {
    %c0_i32 = arith.constant 0 : i32
    %c0_i32_0 = arith.constant 0 : i32
    return %arg0, %arg1, %c0_i32 : i32, i32, i32
  }
}

</mosaic_0001>

<llo_original>
// kernel: tpu_custom_call.1
$region0: #{tpu_custom_call.1}
  #allocation0 [shape = 'u32[]', space=smem, size = 0x4, offset = 0x4, fixed_abs, tag = 'smem constant byte address 0x4 - core index']
  #allocation1 [shape = 'u32[144,128]{1,0:T(1,128)}', space=vmem, size = 0x12000, scoped, tag = 'internal scratch']
  #allocation2 [shape = 'f32[8,288]{1,0:T(8,128)}', space=vmem, size = 0x3000, scoped, tag = 'scratch operand']
  #allocation3 [shape = 'f32[36,288]{1,0:T(8,128)}', space=vmem, size = 0xf000, scoped, tag = 'scratch operand']
  #allocation4 [shape = 'f32[4,326]{1,0:T(4,128)}', space=vmem, size = 0x1800, scoped, tag = 'scratch operand']
  %s0 = inlined_call_operand.hbm [shape: f32[1,8,36], index: 0, kind: input, shape index: {}]
  %s1 = inlined_call_operand.vmem [shape: f32[8,1], index: 1, kind: input, shape index: {}]
  %s2 = inlined_call_operand.vmem [shape: f32[2,4,256], index: 2, kind: input, shape index: {}]
  %s3 = inlined_call_operand.hbm [shape: f32[2,8,288], index: 3, kind: output, shape index: {}]
  %s4 = sld [smem:[#allocation0]]
  $region57: #{tpu_custom_call.1} parent=0
    _
  %s6 = ssub.s32 1, %s4
  %s7 = scalar_select 0, %s6, %s4
  $region1: #{tpu_custom_call.1} parent=0
    #allocation5 [shape = 'u8[4096]{0}', space=vmem, size = 0x1000, scoped, tag = 'input window, operand 0, single buffered']
    #allocation6 [shape = 's32[2]{0}', space=sflag, size = 0x8, scoped, tag = 'scoped memory for tpu_custom_call.1']
    #allocation7 [shape = 's32[2]{0}', space=sflag, size = 0x8, scoped, tag = 'scoped memory for tpu_custom_call.1']
    #allocation8 [shape = 'u8[24576]{0}', space=vmem, size = 0x6000, scoped, tag = 'output window, operand 0']
    %8 = vsyncpa [#allocation6], 0
    %9 = vsyncpa [#allocation7], 0
    %s10 = scalar_lea.sflag [#allocation7], 1
    %11 = vsyncpa %s10, 0
    loop: start=0, step=1, limit=4
    $region2: #{tpu_custom_call.1} parent=1 // loop_pre_header
      _
    $region3: #{tpu_custom_call.1} parent=1 // loop_header
      %s13 = sphi 0, %s17
      %p14 = scmp.ge.s32.totalorder %s13, 4
      %s20 = sphi 0, %s39
      %s21 = sphi 0, %s35
      %s22 = sphi 0, %s31
      %s23 = sphi 0, %s20
      %s24 = sphi 0, %s21
      %s25 = sphi 0, %s22
      %s26 = sphi 0, %s23
      %s27 = sphi 0, %s24
      %s28 = sphi 0, %s25
      %s42 = sphi 0, %s44
      %s45 = sphi 0, %s42
      %s46 = sphi 0, %s45
      %s62 = sphi 0, %s46
      %s68 = sphi 0, %s70
      %s71 = sphi 0, %s68
      %s72 = sphi 0, %s71
      %s88 = sphi 0, %s72
      %s96 = sphi 0, %s98
      %s99 = sphi 0, %s96
      %s100 = sphi 0, %s99
      %s116 = sphi 0, %s100
      %s124 = sphi 0, %s126
      %s127 = sphi 0, %s124
      %s128 = sphi 0, %s127
      %s144 = sphi 0, %s128
    $region4: #{tpu_custom_call.1} parent=1 // loop_header_branch
      %16 = sbr.rel (%p14) target = $region8
    $region5: #{tpu_custom_call.1} parent=1 // loop_body
      %s18 = ssub.s32 %s13, 1
      %s19 = ssub.s32 %s13, 2
      %s29 = sadd.s32 1, %s22
      %p30 = scmp.ge.s32.totalorder %s29, 1
      %s31 = scalar_select %p30, 0, %s29
      %s32 = sadd.s32 1, %s21
      %s33 = scalar_select %p30, %s32, %s21
      %p34 = scmp.ge.s32.totalorder %s33, 1
      %s35 = scalar_select %p34, 0, %s33
      %s36 = sadd.s32 1, %s20
      %s37 = scalar_select %p34, %s36, %s20
      %p38 = scmp.ge.s32.totalorder %s37, 2
      %s39 = scalar_select %p38, 0, %s37
      %s40 = ssub.s32 %s21, %s35
      %p41 = scmp.eq.s32.totalorder %s40, 0
      %s43 = sadd.s32 %s42, 1
      %s44 = scalar_select %p41, %s42, %s43
      %p47 = pneg %p41
      %p48 = scmp.eq.s32.totalorder %s13, 1
      %p49 = por %p47, %p48
      %p50 = scmp.ne.s32.totalorder %s42, %s45
      %p51 = scmp.eq.s32.totalorder %s13, 0
      %p52 = por %p50, %p51
      %p53 = scmp.ne.s32.totalorder %s42, %s45
      %p54 = scmp.eq.s32.totalorder %s18, 1
      %p55 = por %p53, %p54
      %p56 = scmp.ne.s32.totalorder %s45, %s46
      %p57 = scmp.eq.s32.totalorder %s18, 0
      %p58 = por %p56, %p57
      %p59 = scmp.ne.s32.totalorder %s45, %s46
      %p60 = scmp.eq.s32.totalorder %s19, 1
      %p61 = por %p59, %p60
      %p63 = scmp.ne.s32.totalorder %s46, %s62
      %p64 = scmp.eq.s32.totalorder %s19, 0
      %p65 = por %p63, %p64
      %s66 = ssub.s32 %s21, %s35
      %p67 = scmp.eq.s32.totalorder %s66, 0
      %s69 = sadd.s32 %s68, 1
      %s70 = scalar_select %p67, %s68, %s69
      %p73 = pneg %p67
      %p74 = scmp.eq.s32.totalorder %s13, 1
      %p75 = por %p73, %p74
      %p76 = scmp.ne.s32.totalorder %s68, %s71
      %p77 = scmp.eq.s32.totalorder %s13, 0
      %p78 = por %p76, %p77
      %p79 = scmp.ne.s32.totalorder %s68, %s71
      %p80 = scmp.eq.s32.totalorder %s18, 1
      %p81 = por %p79, %p80
      %p82 = scmp.ne.s32.totalorder %s71, %s72
      %p83 = scmp.eq.s32.totalorder %s18, 0
      %p84 = por %p82, %p83
      %p85 = scmp.ne.s32.totalorder %s71, %s72
      %p86 = scmp.eq.s32.totalorder %s19, 1
      %p87 = por %p85, %p86
      %p89 = scmp.ne.s32.totalorder %s72, %s88
      %p90 = scmp.eq.s32.totalorder %s19, 0
      %p91 = por %p89, %p90
      %s92 = ssub.s32 %s20, %s39
      %s93 = ssub.s32 %s22, %s31
      %s94 = sor.u32 %s92, %s93
      %p95 = scmp.eq.s32.totalorder %s94, 0
      %s97 = sadd.s32 %s96, 1
      %s98 = scalar_select %p95, %s96, %s97
      %p101 = pneg %p95
      %p102 = scmp.eq.s32.totalorder %s13, 1
      %p103 = por %p101, %p102
      %p104 = scmp.ne.s32.totalorder %s96, %s99
      %p105 = scmp.eq.s32.totalorder %s13, 0
      %p106 = por %p104, %p105
      %p107 = scmp.ne.s32.totalorder %s96, %s99
      %p108 = scmp.eq.s32.totalorder %s18, 1
      %p109 = por %p107, %p108
      %p110 = scmp.ne.s32.totalorder %s99, %s100
      %p111 = scmp.eq.s32.totalorder %s18, 0
      %p112 = por %p110, %p111
      %p113 = scmp.ne.s32.totalorder %s99, %s100
      %p114 = scmp.eq.s32.totalorder %s19, 1
      %p115 = por %p113, %p114
      %p117 = scmp.ne.s32.totalorder %s100, %s116
      %p118 = scmp.eq.s32.totalorder %s19, 0
      %p119 = por %p117, %p118
      %s120 = ssub.s32 %s20, %s39
      %s121 = ssub.s32 %s21, %s35
      %s122 = sor.u32 %s120, %s121
      %p123 = scmp.eq.s32.totalorder %s122, 0
      %s125 = sadd.s32 %s124, 1
      %s126 = scalar_select %p123, %s124, %s125
      %p129 = pneg %p123
      %p130 = scmp.eq.s32.totalorder %s13, 1
      %p131 = por %p129, %p130
      %p132 = scmp.ne.s32.totalorder %s124, %s127
      %p133 = scmp.eq.s32.totalorder %s13, 0
      %p134 = por %p132, %p133
      %p135 = scmp.ne.s32.totalorder %s124, %s127
      %p136 = scmp.eq.s32.totalorder %s18, 1
      %p137 = por %p135, %p136
      %p138 = scmp.ne.s32.totalorder %s127, %s128
      %p139 = scmp.eq.s32.totalorder %s18, 0
      %p140 = por %p138, %p139
      %p141 = scmp.ne.s32.totalorder %s127, %s128
      %p142 = scmp.eq.s32.totalorder %s19, 1
      %p143 = por %p141, %p142
      %p145 = scmp.ne.s32.totalorder %s128, %s144
      %p146 = scmp.eq.s32.totalorder %s19, 0
      %p147 = por %p145, %p146
      %p148 = scmp.le.s32.totalorder 1, %s13
      %p149 = scmp.lt.s32.totalorder %s13, 3
      %p150 = pnand %p148, %p149
      %p151 = pneg %p150
      // Predicated region
      $region9: #{tpu_custom_call.1} parent=5 // pred_check
        _
      $region10: #{tpu_custom_call.1} parent=5 // pred_check_branch
        %153 = sbr.rel (%p150) target = $region12
      $region11: #{tpu_custom_call.1} parent=5 // pred_region
        %s154 = ssub.s32 %s13, 1
        // Predicated region
        $region13: #{tpu_custom_call.1} parent=11 // pred_check
          %p155 = pneg %p58
        $region14: #{tpu_custom_call.1} parent=11 // pred_check_branch
          %157 = sbr.rel (%p155) target = $region16
        $region15: #{tpu_custom_call.1} parent=11 // pred_region
          %s159 = ssub.s32 128, 128
          %160 = vsyncadd [#allocation6], %s159
          %s161 = smul.addr %s24, 128
          %s162 = scalar_lea.hbm %s0, %s161
          %s164 = sshll.u32 [#allocation5], 4
          %s165 = int_to_ptr.vmem [resolvable:$true] %s164
          %167 = dma.hbm_to_vmem [thread:$0]  %s162, 128, %s165, [#allocation6]
        $region16: #{tpu_custom_call.1} parent=11 // pred_fallthru
          _
        // Predicated region
        $region17: #{tpu_custom_call.1} parent=11 // pred_check
          %p168 = pneg %p84
        $region18: #{tpu_custom_call.1} parent=11 // pred_check_branch
          %170 = sbr.rel (%p168) target = $region20
        $region19: #{tpu_custom_call.1} parent=11 // pred_region
          %p171 = scmp.lt.s32.totalorder %s24, 0
          %s172 = scalar_select %p171, %s24, 0
          %s173 = smul.addr %s172, 8
          %s174 = scalar_lea.vmem %s1, %s173
        $region20: #{tpu_custom_call.1} parent=11 // pred_fallthru
          _
      $region12: #{tpu_custom_call.1} parent=5 // pred_fallthru
        _
      %p175 = scmp.lt.s32.totalorder %s13, 2
      // Predicated region
      $region21: #{tpu_custom_call.1} parent=5 // pred_check
        %p176 = pneg %p175
      $region22: #{tpu_custom_call.1} parent=5 // pred_check_branch
        %178 = sbr.rel (%p176) target = $region24
      $region23: #{tpu_custom_call.1} parent=5 // pred_region
        // Predicated region
        $region25: #{tpu_custom_call.1} parent=23 // pred_check
          %p179 = pneg %p106
        $region26: #{tpu_custom_call.1} parent=23 // pred_check_branch
          %181 = sbr.rel (%p179) target = $region28
        $region27: #{tpu_custom_call.1} parent=23 // pred_region
          %p182 = scmp.lt.s32.totalorder %s20, 1
          %s183 = scalar_select %p182, %s20, 1
          %p184 = scmp.lt.s32.totalorder %s22, 0
          %s185 = scalar_select %p184, %s22, 0
          %s186 = smul.addr %s185, 2
          %s187 = smul.addr %s183, 2
          %s188 = sadd.s32 %s186, %s187
          %s189 = smul.addr %s188, 4
          %s190 = scalar_lea.vmem %s2, %s189
        $region28: #{tpu_custom_call.1} parent=23 // pred_fallthru
          _
      $region24: #{tpu_custom_call.1} parent=5 // pred_fallthru
        _
      %p191 = scmp.le.s32.totalorder 1, %s13
      %p192 = scmp.lt.s32.totalorder %s13, 3
      %p193 = pnand %p191, %p192
      %p194 = pneg %p193
      // Predicated region
      $region29: #{tpu_custom_call.1} parent=5 // pred_check
        _
      $region30: #{tpu_custom_call.1} parent=5 // pred_check_branch
        %196 = sbr.rel (%p193) target = $region32
      $region31: #{tpu_custom_call.1} parent=5 // pred_region
        %s197 = ssub.s32 %s13, 1
        // Predicated region
        $region33: #{tpu_custom_call.1} parent=31 // pred_check
          %p198 = pneg %p58
        $region34: #{tpu_custom_call.1} parent=31 // pred_check_branch
          %200 = sbr.rel (%p198) target = $region36
        $region35: #{tpu_custom_call.1} parent=31 // pred_region
          %201 = dma.done [#allocation6], 128
        $region36: #{tpu_custom_call.1} parent=31 // pred_fallthru
          _
        %p202 = pneg %p58
        %p203 = pneg %p55
        %p204 = scmp.lt.s32.totalorder %s24, 0
        %s205 = scalar_select %p204, %s24, 0
        %s206 = smul.addr %s205, 8
        %s207 = scalar_lea.vmem %s1, %s206
        %p208 = pneg %p84
        %p209 = pneg %p81
        %p210 = scmp.lt.s32.totalorder %s23, 1
        %s211 = scalar_select %p210, %s23, 1
        %p212 = scmp.lt.s32.totalorder %s25, 0
        %s213 = scalar_select %p212, %s25, 0
        %s214 = smul.addr %s213, 2
        %s215 = smul.addr %s211, 2
        %s216 = sadd.s32 %s214, %s215
        %s217 = smul.addr %s216, 4
        %s218 = scalar_lea.vmem %s2, %s217
        %p219 = pneg %p112
        %p220 = pneg %p109
        %p221 = pneg %p140
        %p222 = pneg %p137
        %s223 = sand.u32 %s127, 1
        %s224 = scalar_lea.sflag [#allocation7], %s223
        %s225 = sand.u32 %s127, 1
        %s226 = smul.addr %s225, 24
        %s227 = scalar_lea.vmem [#allocation8], %s226
        %p228 = scmp.lt.s32.totalorder %s24, 0
        %s229 = scalar_select %p228, %s24, 0
        %s230 = smul.addr %s229, 8
        %s231 = scalar_lea.vmem %s1, %s230
        %p232 = scmp.lt.s32.totalorder %s23, 1
        %s233 = scalar_select %p232, %s23, 1
        %p234 = scmp.lt.s32.totalorder %s25, 0
        %s235 = scalar_select %p234, %s25, 0
        %s236 = smul.addr %s235, 2
        %s237 = smul.addr %s233, 2
        %s238 = sadd.s32 %s236, %s237
        %s239 = smul.addr %s238, 4
        %s240 = scalar_lea.vmem %s2, %s239
        %p241 = scmp.eq.s32.totalorder %s25, 0
        // Predicated region
        $region37: #{tpu_custom_call.1} parent=31 // pred_check
          %p242 = pneg %p241
        $region38: #{tpu_custom_call.1} parent=31 // pred_check_branch
          %244 = sbr.rel (%p242) target = $region40
        $region39: #{tpu_custom_call.1} parent=31 // pred_region
          %245 = vst [vmem:[#allocation2] sm:$0xff] 0.0
          %246 = vst [vmem:[#allocation2 + $0x8] sm:$0xff] 0.0
          %vm247 = vcmask 261120
          %248 = vst.msk [vmem:[#allocation2 + $0x10] sm:$0xff] %vm247, 0.0
          %249 = vst [vmem:[#allocation4] sm:$0xff] 0.0
          %vm250 = vcmask 568320
          %251 = vst.msk [vmem:[#allocation4 + $0x8] sm:$0xf] %vm250, 0.0
        $region40: #{tpu_custom_call.1} parent=31 // pred_fallthru
          _
        %v252 = vld [vmem:[%s240] sm:$0xf]
        %254 = vrot.lane.b32.xlu0 %v252, 19
        %v255 = vpop.permute.xlu0 %254
        %vm257 = vcmask 281752
        %258 = vst.msk [vmem:[#allocation4] sm:$0xf] %vm257, %v255
        %v259 = vld [vmem:[%s240] sm:$0xf]
        %261 = vrot.lane.b32.xlu0 %v259, 21
        %v262 = vpop.permute.xlu0 %261
        %vm264 = vcmask 429352
        %265 = vst.msk [vmem:[#allocation4] sm:$0xf] %vm264, %v262
        %v266 = vld [vmem:[%s240] sm:$0xf]
        %268 = vrot.lane.b32.xlu0 %v266, 23
        %v269 = vpop.permute.xlu0 %268
        %vm271 = vcmask 576952
        %272 = vst.msk [vmem:[#allocation4] sm:$0xf] %vm271, %v269
        %v273 = vld [vmem:[%s240] sm:$0xf]
        %275 = vrot.lane.b32.xlu0 %v273, 25
        %v276 = vpop.permute.xlu0 %275
        %vm278 = vcmask 724552
        %279 = vst.msk [vmem:[#allocation4] sm:$0xf] %vm278, %v276
        %v280 = vld [vmem:[%s240] sm:$0xf]
        %282 = vrot.lane.b32.xlu0 %v280, 27
        %v283 = vpop.permute.xlu0 %282
        %vm285 = vcmask 872152
        %286 = vst.msk [vmem:[#allocation4] sm:$0xf] %vm285, %v283
        %v287 = vld [vmem:[%s240] sm:$0xf]
        %289 = vrot.lane.b32.xlu0 %v287, 29
        %v290 = vpop.permute.xlu0 %289
        %vm292 = vcmask 1019752
        %293 = vst.msk [vmem:[#allocation4] sm:$0xf] %vm292, %v290
        %v294 = vld [vmem:[%s240] sm:$0xf]
        %296 = vrot.lane.b32.xlu0 %v294, 31
        %v297 = vpop.permute.xlu0 %296
        %v298 = vrot.slane %v297, 4
        %vm299 = vcmask 252928
        %v300 = vsel %vm299, %v298, %v297
        %vm302 = vcmask 1044472
        %vm303 = vcmask 121860
        %vm304 = vmor %vm303, %vm302
        %305 = vst.msk [vmem:[#allocation4] sm:$0xff] %vm304, %v300
        %v306 = vld [vmem:[%s240] sm:$0xf]
        %308 = vrot.lane.b32.xlu0 %v306, 33
        %v309 = vpop.permute.xlu0 %308
        %vm311 = vcmask 265352
        %312 = vst.msk [vmem:[#allocation4 + $0x4] sm:$0xf] %vm311, %v309
        %v313 = vld [vmem:[%s240 + $0x4] sm:$0xf]
        %315 = vrot.lane.b32.xlu0 %v313, 35
        %v316 = vpop.permute.xlu0 %315
        %vm318 = vcmask 412952
        %319 = vst.msk [vmem:[#allocation4 + $0x4] sm:$0xf] %vm318, %v316
        %v320 = vld [vmem:[%s240 + $0x4] sm:$0xf]
        %322 = vrot.lane.b32.xlu0 %v320, 37
        %v323 = vpop.permute.xlu0 %322
        %vm325 = vcmask 560552
        %326 = vst.msk [vmem:[#allocation4 + $0x4] sm:$0xf] %vm325, %v323
        %v327 = vld [vmem:[%s240 + $0x4] sm:$0xf]
        %329 = vrot.lane.b32.xlu0 %v327, 39
        %v330 = vpop.permute.xlu0 %329
        %vm332 = vcmask 708152
        %333 = vst.msk [vmem:[#allocation4 + $0x4] sm:$0xf] %vm332, %v330
        %v334 = vld [vmem:[%s240 + $0x4] sm:$0xf]
        %336 = vrot.lane.b32.xlu0 %v334, 41
        %v337 = vpop.permute.xlu0 %336
        %vm339 = vcmask 855752
        %340 = vst.msk [vmem:[#allocation4 + $0x4] sm:$0xf] %vm339, %v337
        %v341 = vld [vmem:[%s240 + $0x4] sm:$0xf]
        %343 = vrot.lane.b32.xlu0 %v341, 43
        %v344 = vpop.permute.xlu0 %343
        %vm346 = vcmask 1003352
        %347 = vst.msk [vmem:[#allocation4 + $0x4] sm:$0xf] %vm346, %v344
        %v348 = vld [vmem:[%s240 + $0x4] sm:$0xf]
        %350 = vrot.lane.b32.xlu0 %v348, 45
        %v351 = vpop.permute.xlu0 %350
        %v352 = vrot.slane %v351, 4
        %vm353 = vcmask 367616
        %v354 = vsel %vm353, %v352, %v351
        %vm356 = vcmask 1044456
        %vm357 = vcmask 105476
        %vm358 = vmor %vm357, %vm356
        %359 = vst.msk [vmem:[#allocation4 + $0x4] sm:$0xff] %vm358, %v354
        %v360 = vld [vmem:[%s240 + $0x4] sm:$0xf]
        %362 = vrot.lane.b32.xlu0 %v360, 47
        %v363 = vpop.permute.xlu0 %362
        %vm365 = vcmask 248952
        %366 = vst.msk [vmem:[#allocation4 + $0x8] sm:$0xf] %vm365, %v363
        %v367 = vld [vmem:[%s240 + $0x4] sm:$0xf]
        %369 = vrot.lane.b32.xlu0 %v367, 49
        %v370 = vpop.permute.xlu0 %369
        %vm372 = vcmask 396552
        %373 = vst.msk [vmem:[#allocation4 + $0x8] sm:$0xf] %vm372, %v370
        %v374 = vld [vmem:[#allocation4] sm:$0xff]
        %v375 = vld [vmem:[#allocation4 + $0x8] sm:$0xf]
        %v377 = vcombine.high %v374, %v374
        %379 = vst [vmem:[#allocation3] sm:$0xf] %v374
        %380 = vst [vmem:[#allocation3 + $0x8] sm:$0xf] %v377
        %vm381 = vcmask 257024
        %382 = vst.msk [vmem:[#allocation3 + $0x10] sm:$0xf] %vm381, %v375
        %v383 = vld [vmem:[#allocation4] sm:$0xff]
        %v384 = vld [vmem:[#allocation4 + $0x8] sm:$0xf]
        %v387 = vcombine.low %v383, %v383
        %v388 = vcombine.low %v384, %v384
        %389 = vrot.lane.b32.xlu0 %v387, 127
        %v390 = vpop.permute.xlu0 %389
        %391 = vrot.lane.b32.xlu0 %v383, 127
        %v392 = vpop.permute.xlu0 %391
        %393 = vrot.lane.b32.xlu0 %v388, 127
        %v394 = vpop.permute.xlu0 %393
        %vm395 = vcmask 1039360
        %v396 = vsel %vm395, %v390, %v392
        %v397 = vsel %vm395, %v392, %v394
        %401 = vst [vmem:[#allocation3] sm:$0xf0] %v396
        %402 = vst [vmem:[#allocation3 + $0x8] sm:$0xf0] %v397
        %vm403 = vcmask 261124
        %404 = vst.msk [vmem:[#allocation3 + $0x10] sm:$0xf0] %vm403, %v394
        %v405 = vld [vmem:[#allocation4] sm:$0xff]
        %v406 = vld [vmem:[#allocation4 + $0x8] sm:$0xf]
        %v409 = vcombine.high %v405, %v405
        %410 = vrot.lane.b32.xlu0 %v405, 126
        %v411 = vpop.permute.xlu0 %410
        %412 = vrot.lane.b32.xlu0 %v409, 126
        %v413 = vpop.permute.xlu0 %412
        %414 = vrot.lane.b32.xlu0 %v406, 126
        %v415 = vpop.permute.xlu0 %414
        %vm416 = vcmask 1031168
        %v417 = vsel %vm416, %v411, %v413
        %v418 = vsel %vm416, %v413, %v415
        %422 = vst [vmem:[#allocation3 + $0x18] sm:$0xf] %v417
        %423 = vst [vmem:[#allocation3 + $0x20] sm:$0xf] %v418
        %424 = vst.msk [vmem:[#allocation3 + $0x28] sm:$0xf] %vm381, %v415
        %v425 = vld [vmem:[#allocation4] sm:$0xff]
        %v426 = vld [vmem:[#allocation4 + $0x8] sm:$0xf]
        %v429 = vcombine.low %v425, %v425
        %v430 = vcombine.low %v426, %v426
        %431 = vrot.lane.b32.xlu0 %v429, 110
        %v432 = vpop.permute.xlu0 %431
        %433 = vrot.lane.b32.xlu0 %v425, 110
        %v434 = vpop.permute.xlu0 %433
        %435 = vrot.lane.b32.xlu0 %v430, 110
        %v436 = vpop.permute.xlu0 %435
        %vm437 = vcmask 900096
        %v438 = vsel %vm437, %v432, %v434
        %v439 = vsel %vm437, %v434, %v436
        %443 = vst [vmem:[#allocation3 + $0x18] sm:$0xf0] %v438
        %444 = vst [vmem:[#allocation3 + $0x20] sm:$0xf0] %v439
        %445 = vst.msk [vmem:[#allocation3 + $0x28] sm:$0xf0] %vm403, %v436
        %v446 = vld [vmem:[#allocation4] sm:$0xff]
        %v447 = vld [vmem:[#allocation4 + $0x8] sm:$0xf]
        %v450 = vcombine.high %v446, %v446
        %451 = vrot.lane.b32.xlu0 %v446, 109
        %v452 = vpop.permute.xlu0 %451
        %453 = vrot.lane.b32.xlu0 %v450, 109
        %v454 = vpop.permute.xlu0 %453
        %455 = vrot.lane.b32.xlu0 %v447, 109
        %v456 = vpop.permute.xlu0 %455
        %vm457 = vcmask 891904
        %v458 = vsel %vm457, %v452, %v454
        %v459 = vsel %vm457, %v454, %v456
        %463 = vst [vmem:[#allocation3 + $0x30] sm:$0xf] %v458
        %464 = vst [vmem:[#allocation3 + $0x38] sm:$0xf] %v459
        %465 = vst.msk [vmem:[#allocation3 + $0x40] sm:$0xf] %vm381, %v456
        %v466 = vld [vmem:[#allocation4] sm:$0xff]
        %v467 = vld [vmem:[#allocation4 + $0x8] sm:$0xf]
        %v470 = vcombine.low %v466, %v466
        %v471 = vcombine.low %v467, %v467
        %472 = vrot.lane.b32.xlu0 %v470, 108
        %v473 = vpop.permute.xlu0 %472
        %474 = vrot.lane.b32.xlu0 %v466, 108
        %v475 = vpop.permute.xlu0 %474
        %476 = vrot.lane.b32.xlu0 %v471, 108
        %v477 = vpop.permute.xlu0 %476
        %vm478 = vcmask 883712
        %v479 = vsel %vm478, %v473, %v475
        %v480 = vsel %vm478, %v475, %v477
        %484 = vst [vmem:[#allocation3 + $0x30] sm:$0xf0] %v479
        %485 = vst [vmem:[#allocation3 + $0x38] sm:$0xf0] %v480
        %486 = vst.msk [vmem:[#allocation3 + $0x40] sm:$0xf0] %vm403, %v477
        %v487 = vld [vmem:[#allocation4] sm:$0xff]
        %v488 = vld [vmem:[#allocation4 + $0x8] sm:$0xf]
        %v491 = vcombine.high %v487, %v487
        %492 = vrot.lane.b32.xlu0 %v487, 92
        %v493 = vpop.permute.xlu0 %492
        %494 = vrot.lane.b32.xlu0 %v491, 92
        %v495 = vpop.permute.xlu0 %494
        %496 = vrot.lane.b32.xlu0 %v488, 92
        %v497 = vpop.permute.xlu0 %496
        %vm498 = vcmask 752640
        %v499 = vsel %vm498, %v493, %v495
        %v500 = vsel %vm498, %v495, %v497
        %504 = vst [vmem:[#allocation3 + $0x48] sm:$0xf] %v499
        %505 = vst [vmem:[#allocation3 + $0x50] sm:$0xf] %v500
        %506 = vst.msk [vmem:[#allocation3 + $0x58] sm:$0xf] %vm381, %v497
        %v507 = vld [vmem:[#allocation4] sm:$0xff]
        %v508 = vld [vmem:[#allocation4 + $0x8] sm:$0xf]
        %v511 = vcombine.low %v507, %v507
        %v512 = vcombine.low %v508, %v508
        %513 = vrot.lane.b32.xlu0 %v511, 91
        %v514 = vpop.permute.xlu0 %513
        %515 = vrot.lane.b32.xlu0 %v507, 91
        %v516 = vpop.permute.xlu0 %515
        %517 = vrot.lane.b32.xlu0 %v512, 91
        %v518 = vpop.permute.xlu0 %517
        %vm519 = vcmask 744448
        %v520 = vsel %vm519, %v514, %v516
        %v521 = vsel %vm519, %v516, %v518
        %525 = vst [vmem:[#allocation3 + $0x48] sm:$0xf0] %v520
        %526 = vst [vmem:[#allocation3 + $0x50] sm:$0xf0] %v521
        %527 = vst.msk [vmem:[#allocation3 + $0x58] sm:$0xf0] %vm403, %v518
        %v528 = vld [vmem:[#allocation4] sm:$0xff]
        %v529 = vld [vmem:[#allocation4 + $0x8] sm:$0xf]
        %v532 = vcombine.high %v528, %v528
        %533 = vrot.lane.b32.xlu0 %v528, 90
        %v534 = vpop.permute.xlu0 %533
        %535 = vrot.lane.b32.xlu0 %v532, 90
        %v536 = vpop.permute.xlu0 %535
        %537 = vrot.lane.b32.xlu0 %v529, 90
        %v538 = vpop.permute.xlu0 %537
        %vm539 = vcmask 736256
        %v540 = vsel %vm539, %v534, %v536
        %v541 = vsel %vm539, %v536, %v538
        %545 = vst [vmem:[#allocation3 + $0x60] sm:$0xf] %v540
        %546 = vst [vmem:[#allocation3 + $0x68] sm:$0xf] %v541
        %547 = vst.msk [vmem:[#allocation3 + $0x70] sm:$0xf] %vm381, %v538
        %s548 = smul.u32 %s25, 8
        %s549 = scalar_lea.vmem [#allocation5], %s548
        %v550 = vld [vmem:[%s549] sm:$0xff]
        %v551 = vld [vmem:[#allocation2] sm:$0xff]
        %v552 = vld [vmem:[#allocation2 + $0x8] sm:$0xff]
        %v553 = vld [vmem:[#allocation2 + $0x10] sm:$0xff]
        %v554 = vld [vmem:[#allocation3] sm:$0xff]
        %v555 = vld [vmem:[#allocation3 + $0x8] sm:$0xff]
        %v556 = vld [vmem:[#allocation3 + $0x10] sm:$0xff]
        %v557 = vld [vmem:[#allocation3 + $0x18] sm:$0xff]
        %v558 = vld [vmem:[#allocation3 + $0x20] sm:$0xff]
        %v559 = vld [vmem:[#allocation3 + $0x28] sm:$0xff]
        %v560 = vld [vmem:[#allocation3 + $0x30] sm:$0xff]
        %v561 = vld [vmem:[#allocation3 + $0x38] sm:$0xff]
        %v562 = vld [vmem:[#allocation3 + $0x40] sm:$0xff]
        %v563 = vld [vmem:[#allocation3 + $0x48] sm:$0xff]
        %v564 = vld [vmem:[#allocation3 + $0x50] sm:$0xff]
        %v565 = vld [vmem:[#allocation3 + $0x58] sm:$0xff]
        %v566 = vld [vmem:[#allocation3 + $0x60] sm:$0xf]
        %v567 = vld [vmem:[#allocation3 + $0x68] sm:$0xf]
        %v568 = vld [vmem:[#allocation3 + $0x70] sm:$0xf]
        %vm569 = vcmask 293888
        %v571 = vsel %vm569, %v550, 0
        %vm573 = vcmask 1043456
        %v575 = vsel %vm573, %v566, 0
        %v578 = vsel %vm573, %v567, 0
        %v581 = vsel %vm573, %v568, 0
        %583 = vmatprep.subr.mxu0 %v555
        %584 = vmatpush1.msra.mxu0 %v554
        %585 = vmatprep.subr.mxu0 %v558
        %586 = vmatpush1.msra.mxu0 %v557
        %587 = vmatprep.subr.mxu0 %v561
        %588 = vmatpush1.msra.mxu0 %v560
        %589 = vmatprep.subr.mxu0 %v564
        %590 = vmatpush1.msra.mxu0 %v563
        %591 = vmatprep.subr.mxu0 %v578
        %592 = vmatpush1.msra.mxu0 %v575
        %593 = vmatprep.subr.mxu0 0.0
        %594 = vmatpush1.msra.mxu0 0.0
        %595 = vmatprep.subr.mxu0 0.0
        %596 = vmatpush1.msra.mxu0 0.0
        %597 = vmatprep.subr.mxu0 0.0
        %598 = vmatpush1.msra.mxu0 0.0
        %599 = vmatprep.subr.mxu0 0.0
        %600 = vmatpush1.msra.mxu0 0.0
        %601 = vmatprep.subr.mxu0 0.0
        %602 = vmatpush1.msra.mxu0 0.0
        %603 = vmatprep.subr.mxu0 0.0
        %604 = vmatpush1.msra.mxu0 0.0
        %605 = vmatprep.subr.mxu0 0.0
        %606 = vmatpush1.msra.mxu0 0.0
        %607 = vmatprep.subr.mxu0 0.0
        %608 = vmatpush1.msra.mxu0 0.0
        %609 = vmatprep.subr.mxu0 0.0
        %610 = vmatpush1.msra.mxu0 0.0
        %611 = vmatprep.subr.mxu0 0.0
        %612 = vmatpush1.msra.mxu0 0.0
        %613 = vmatprep.subr.mxu0 0.0
        %614 = vmatpush1.msra.mxu0 0.0
        %615 = vmatprep.subr.mxu0 0.0
        %616 = vmatpush1.msra.mxu0 0.0
        %617 = vmatprep.subr.mxu0 0.0
        %618 = vmatpush1.msra.mxu0 0.0
        %619 = vmatprep.subr.mxu0 0.0
        %620 = vmatpush1.msra.mxu0 0.0
        %621 = vmatprep.subr.mxu0 0.0
        %622 = vmatpush1.msra.mxu0 0.0
        %623 = vmatprep.subr.mxu0 0.0
        %624 = vmatpush1.msra.mxu0 0.0
        %625 = vmatprep.subr.mxu0 0.0
        %626 = vmatpush1.msra.mxu0 0.0
        %627 = vmatprep.subr.mxu0 0.0
        %628 = vmatpush1.msra.mxu0 0.0
        %629 = vmatprep.subr.mxu0 0.0
        %630 = vmatpush1.msra.mxu0 0.0
        %631 = vmatprep.subr.mxu0 0.0
        %632 = vmatpush1.msra.mxu0 0.0
        %633 = vmatprep.subr.mxu0 0.0
        %634 = vmatpush1.msra.mxu0 0.0
        %635 = vmatprep.subr.mxu0 0.0
        %636 = vmatpush1.msra.mxu0 0.0
        %637 = vmatprep.subr.mxu0 0.0
        %638 = vmatpush1.msra.mxu0 0.0
        %639 = vmatprep.subr.mxu0 0.0
        %640 = vmatpush1.msra.mxu0 0.0
        %641 = vmatprep.subr.mxu0 0.0
        %642 = vmatpush1.msra.mxu0 0.0
        %643 = vmatprep.subr.mxu0 0.0
        %644 = vmatpush1.msra.mxu0 0.0
        %645 = vmatprep.subr.mxu0 0.0
        %646 = vmatpush1.msra.mxu0 0.0
        %647 = vmatprep.mubr.f32.mxu0 0.0
        %648 = vmatmul.mubr.f32.gmra.mrb[0].mxu0 %v571
        %v649 = vpop.f32.mrb[0].mxu0
        %v650 = vadd.f32 0.0, %v649
        %v651 = vpop.f32.mrb[0].mxu0
        %v652 = vadd.f32 0.0, %v651
        %653 = vdwg.mxu0
        %654 = vmatprep.subr.mxu0 0.0
        %655 = vmatpush1.msra.mxu0 %v556
        %656 = vmatprep.subr.mxu0 0.0
        %657 = vmatpush1.msra.mxu0 %v559
        %658 = vmatprep.subr.mxu0 0.0
        %659 = vmatpush1.msra.mxu0 %v562
        %660 = vmatprep.subr.mxu0 0.0
        %661 = vmatpush1.msra.mxu0 %v565
        %662 = vmatprep.subr.mxu0 0.0
        %663 = vmatpush1.msra.mxu0 %v581
        %664 = vmatprep.subr.mxu0 0.0
        %665 = vmatpush1.msra.mxu0 0.0
        %666 = vmatprep.subr.mxu0 0.0
        %667 = vmatpush1.msra.mxu0 0.0
        %668 = vmatprep.subr.mxu0 0.0
        %669 = vmatpush1.msra.mxu0 0.0
        %670 = vmatprep.subr.mxu0 0.0
        %671 = vmatpush1.msra.mxu0 0.0
        %672 = vmatprep.subr.mxu0 0.0
        %673 = vmatpush1.msra.mxu0 0.0
        %674 = vmatprep.subr.mxu0 0.0
        %675 = vmatpush1.msra.mxu0 0.0
        %676 = vmatprep.subr.mxu0 0.0
        %677 = vmatpush1.msra.mxu0 0.0
        %678 = vmatprep.subr.mxu0 0.0
        %679 = vmatpush1.msra.mxu0 0.0
        %680 = vmatprep.subr.mxu0 0.0
        %681 = vmatpush1.msra.mxu0 0.0
        %682 = vmatprep.subr.mxu0 0.0
        %683 = vmatpush1.msra.mxu0 0.0
        %684 = vmatprep.subr.mxu0 0.0
        %685 = vmatpush1.msra.mxu0 0.0
        %686 = vmatprep.subr.mxu0 0.0
        %687 = vmatpush1.msra.mxu0 0.0
        %688 = vmatprep.subr.mxu0 0.0
        %689 = vmatpush1.msra.mxu0 0.0
        %690 = vmatprep.subr.mxu0 0.0
        %691 = vmatpush1.msra.mxu0 0.0
        %692 = vmatprep.subr.mxu0 0.0
        %693 = vmatpush1.msra.mxu0 0.0
        %694 = vmatprep.subr.mxu0 0.0
        %695 = vmatpush1.msra.mxu0 0.0
        %696 = vmatprep.subr.mxu0 0.0
        %697 = vmatpush1.msra.mxu0 0.0
        %698 = vmatprep.subr.mxu0 0.0
        %699 = vmatpush1.msra.mxu0 0.0
        %700 = vmatprep.subr.mxu0 0.0
        %701 = vmatpush1.msra.mxu0 0.0
        %702 = vmatprep.subr.mxu0 0.0
        %703 = vmatpush1.msra.mxu0 0.0
        %704 = vmatprep.subr.mxu0 0.0
        %705 = vmatpush1.msra.mxu0 0.0
        %706 = vmatprep.subr.mxu0 0.0
        %707 = vmatpush1.msra.mxu0 0.0
        %708 = vmatprep.subr.mxu0 0.0
        %709 = vmatpush1.msra.mxu0 0.0
        %710 = vmatprep.subr.mxu0 0.0
        %711 = vmatpush1.msra.mxu0 0.0
        %712 = vmatprep.subr.mxu0 0.0
        %713 = vmatpush1.msra.mxu0 0.0
        %714 = vmatprep.subr.mxu0 0.0
        %715 = vmatpush1.msra.mxu0 0.0
        %716 = vmatprep.subr.mxu0 0.0
        %717 = vmatpush1.msra.mxu0 0.0
        %718 = vmatprep.mubr.f32.mxu0 0.0
        %719 = vmatmul.mubr.f32.gmra.mrb[0].mxu0 %v571
        %v720 = vpop.f32.mrb[0].mxu0
        %v721 = vadd.f32 0.0, %v720
        %v722 = vpop.f32.mrb[0].mxu0
        %723 = vdwg.mxu0
        %v724 = vadd.f32 %v551, %v650
        %v725 = vadd.f32 %v552, %v652
        %v726 = vadd.f32 %v553, %v721
        %727 = vst [vmem:[#allocation2] sm:$0xff] %v724
        %728 = vst [vmem:[#allocation2 + $0x8] sm:$0xff] %v725
        %vm729 = vcmask 261120
        %730 = vst.msk [vmem:[#allocation2 + $0x10] sm:$0xff] %vm729, %v726
        // Predicated region
        $region41: #{tpu_custom_call.1} parent=31 // pred_check
          %p731 = pneg %p241
        $region42: #{tpu_custom_call.1} parent=31 // pred_check_branch
          %733 = sbr.rel (%p731) target = $region44
        $region43: #{tpu_custom_call.1} parent=31 // pred_region
          %v734 = vld [vmem:[#allocation2] sm:$0xff]
          %v735 = vld [vmem:[#allocation2 + $0x8] sm:$0xff]
          %v736 = vld [vmem:[#allocation2 + $0x10] sm:$0xff]
          %v737 = vld [vmem:[%s231] sm:$0xff]
          %739 = vset.pattern.permute.xlu0 0
          %740 = vperm.xlu0 %739, %v737
          %v741 = vpop.permute.xlu0 %740
          %v743 = vadd.f32 %v734, %v741
          %v744 = vadd.f32 %v735, %v741
          %v745 = vadd.f32 %v736, %v741
          %746 = vst [vmem:[%s227] sm:$0xff] %v743
          %747 = vst [vmem:[%s227 + $0x8] sm:$0xff] %v744
          %748 = vst.msk [vmem:[%s227 + $0x10] sm:$0xff] %vm729, %v745
        $region44: #{tpu_custom_call.1} parent=31 // pred_fallthru
          _
        %s749 = sand.u32 %s127, 1
        %s750 = scalar_lea.sflag [#allocation7], %s749
        %s751 = sand.u32 %s127, 1
        %s752 = smul.addr %s751, 24
        %s753 = scalar_lea.vmem [#allocation8], %s752
        // Predicated region
        $region45: #{tpu_custom_call.1} parent=31 // pred_check
          %p754 = pneg %p137
        $region46: #{tpu_custom_call.1} parent=31 // pred_check_branch
          %756 = sbr.rel (%p754) target = $region48
        $region47: #{tpu_custom_call.1} parent=31 // pred_region
          %s758 = ssub.s32 384, 384
          %759 = vsyncadd %s750, %s758
          %s760 = smul.addr %s24, 3
          %s761 = smul.addr %s23, 3
          %s762 = sadd.s32 %s760, %s761
          %s763 = smul.addr %s762, 128
          %s764 = scalar_lea.hbm %s3, %s763
          %s766 = sshll.u32 %s753, 4
          %s767 = int_to_ptr.vmem [resolvable:$true] %s766
          %769 = dma.vmem_to_hbm [thread:$0]  %s767, 384, %s764, %s750
        $region48: #{tpu_custom_call.1} parent=31 // pred_fallthru
          _
      $region32: #{tpu_custom_call.1} parent=5 // pred_fallthru
        _
      %p770 = scmp.le.s32.totalorder 2, %s13
      // Predicated region
      $region49: #{tpu_custom_call.1} parent=5 // pred_check
        %p771 = pneg %p770
      $region50: #{tpu_custom_call.1} parent=5 // pred_check_branch
        %773 = sbr.rel (%p771) target = $region52
      $region51: #{tpu_custom_call.1} parent=5 // pred_region
        %s774 = ssub.s32 %s13, 2
        // Predicated region
        $region53: #{tpu_custom_call.1} parent=51 // pred_check
          %p775 = pneg %p143
        $region54: #{tpu_custom_call.1} parent=51 // pred_check_branch
          %777 = sbr.rel (%p775) target = $region56
        $region55: #{tpu_custom_call.1} parent=51 // pred_region
          %s778 = sand.u32 %s128, 1
          %s779 = scalar_lea.sflag [#allocation7], %s778
          %s780 = sand.u32 %s128, 1
          %s781 = smul.addr %s780, 24
          %s782 = scalar_lea.vmem [#allocation8], %s781
          %783 = dma.done %s779, 384
        $region56: #{tpu_custom_call.1} parent=51 // pred_fallthru
          _
      $region52: #{tpu_custom_call.1} parent=5 // pred_fallthru
        _
    $region6: #{tpu_custom_call.1} parent=1 // loop_footer
      %s17 = sadd.s32 1, %s13
    $region7: #{tpu_custom_call.1} parent=1 // loop_footer_branch
      %12 = sbr.rel target = $region3
    $region8: #{tpu_custom_call.1} parent=1 // loop_exit
      _
    %784 = vsyncpa [#allocation6], 1
    %s785 = scalar_lea.sflag [#allocation6], 1
    %786 = vsyncpa %s785, 1
    %787 = vsyncpa [#allocation7], 1
    %s788 = scalar_lea.sflag [#allocation7], 1
    %789 = vsyncpa %s788, 1

</llo_original>
